<compile_context>
chip_gen: v6e
topology: v6e:2x2x1
jax: 0.10.0
libtpu: 0.0.40
codegen_flags: <defaults>
</compile_context>

<pallas_src>
import functools

import jax
import jax.numpy as jnp
from jax.experimental import pallas as pl
from jax.experimental.pallas import tpu as pltpu


def _round_down(x, m):
    return (x // m) * m


def _cdiv(a, b):
    return -(-a // b)


def _vmem_capacity_bytes():
    try:
        return int(pltpu.get_tpu_info().vmem_capacity_bytes)
    except Exception:
        return 64 * 1024 * 1024  # conservative fallback (fits every generation)


# ---------------------------------------------------------------------------
# Kernel: per-row-tile partial sum of the cross-entropy NLL
# ---------------------------------------------------------------------------


def _ce_partial_kernel(x_ref, t_ref, o_ref, *scratch,
                       n_valid, c_valid, tc, mask_rows, mask_classes):
    """x_ref: (TB, TC) logits tile (native dtype), t_ref: (TB, 1) int32 labels,
    o_ref: (1, 1, 1) f32 partial NLL sum for this row tile.
    scratch (only when the class dim is chunked): m_sc, l_sc, tgt_sc (TB,1) f32."""
    i = pl.program_id(0)
    x = x_ref[...].astype(jnp.float32)               # widen in-kernel
    tb, tcb = x.shape
    t = t_ref[...]                                   # (TB, 1) int32
    col = jax.lax.broadcasted_iota(jnp.int32, (tb, tcb), 1)

    def _row_masked(nll):
        if mask_rows:                                # static: only for ragged N
            row = jax.lax.broadcasted_iota(jnp.int32, (tb, 1), 0) + i * tb
            return jnp.where(row < n_valid, nll, 0.0)
        return nll

    if not scratch:
        # Single class pass: the block covers the full class dim exactly.
        m = jnp.max(x, axis=-1, keepdims=True)                       # (TB,1)
        l = jnp.sum(jnp.exp(x - m), axis=-1, keepdims=True)          # (TB,1)
        tgt = jnp.sum(jnp.where(col == t, x, 0.0), axis=-1, keepdims=True)
        nll = _row_masked(jnp.log(l) + m - tgt)
        o_ref[...] = jnp.sum(nll, keepdims=True).reshape(1, 1, 1)
    else:
        m_sc, l_sc, tgt_sc = scratch
        k = pl.program_id(1)

        @pl.when(k == 0)
        def _():
            m_sc[...] = jnp.full_like(m_sc, -jnp.inf)
            l_sc[...] = jnp.zeros_like(l_sc)
            tgt_sc[...] = jnp.zeros_like(tgt_sc)

        col_g = col + k * tc
        if mask_classes:                             # static: only for ragged C
            xm = jnp.where(col_g < c_valid, x, jnp.float32(-1e30))
        else:
            xm = x

        m_prev = m_sc[...]
        m_new = jnp.maximum(m_prev, jnp.max(xm, axis=-1, keepdims=True))
        alpha = jnp.exp(m_prev - m_new)              # exp(-inf)=0 on first step
        # exp(-1e30 - m_new) underflows to exactly 0: no extra select needed.
        l_sc[...] = alpha * l_sc[...] + jnp.sum(jnp.exp(xm - m_new),
                                                axis=-1, keepdims=True)
        m_sc[...] = m_new
        tgt_sc[...] = tgt_sc[...] + jnp.sum(jnp.where(col_g == t, x, 0.0),
                                            axis=-1, keepdims=True)

        @pl.when(k == pl.num_programs(1) - 1)
        def _():
            nll = _row_masked(jnp.log(l_sc[...]) + m_sc[...] - tgt_sc[...])
            o_ref[...] = jnp.sum(nll, keepdims=True).reshape(1, 1, 1)


# ---------------------------------------------------------------------------
# Wrapper
# ---------------------------------------------------------------------------


def focal_loss(logits, target, gamma=0.0, *, max_class_chunk=None):
    """logits: (N, C) float (any dtype), target: (N,) int -> scalar f32 focal loss."""
    n, c = logits.shape
    in_bytes = jnp.dtype(logits.dtype).itemsize

    # --- VMEM budget / tile sizing (generation aware) -----------------------
    vmem_cap = _vmem_capacity_bytes()
    vmem_limit = int(min(vmem_cap // 2, 64 * 1024 * 1024))   # ~32 MiB v7x, 64 MiB v5e/v6e

    if max_class_chunk is None:
        max_class_chunk = 2048
    max_class_chunk = max(128, _round_down(max_class_chunk, 128))
    tc = max_class_chunk if c > max_class_chunk else c        # chunk or full-C block
    g_c = _cdiv(c, tc)
    mask_classes = (g_c * tc != c)

    # Row tile: double-buffered input tile + ~4 f32 tile temporaries in budget.
    per_elem = 2 * in_bytes + 4 * 4
    tile_budget = (vmem_limit * 3) // 5
    tb = tile_budget // (tc * per_elem)
    if n < 8:
        tb = n                                   # full-dim block (exempt from 8-rule)
    else:
        tb = min(tb, 8192, _round_down(n, 8))
        tb = max(8, _round_down(tb, 8))
    g_r = _cdiv(n, tb)
    mask_rows = (n % tb != 0)

    # --- inputs: streamed in native dtype, no wrapper-side pad --------------
    t2 = target.astype(jnp.int32).reshape(n, 1)

    kernel = functools.partial(
        _ce_partial_kernel,
        n_valid=n, c_valid=c, tc=tc,
        mask_rows=mask_rows, mask_classes=mask_classes,
    )
    scratch = [pltpu.VMEM((tb, 1), jnp.float32)] * 3 if g_c > 1 else []

    partials = pl.pallas_call(
        kernel,
        out_shape=jax.ShapeDtypeStruct((g_r, 1, 1), jnp.float32),
        grid_spec=pltpu.PrefetchScalarGridSpec(
            num_scalar_prefetch=0,
            grid=(g_r, g_c),
            in_specs=[
                pl.BlockSpec((tb, tc), lambda i, k: (i, k)),
                pl.BlockSpec((tb, 1), lambda i, k: (i, 0)),
            ],
            out_specs=pl.BlockSpec((1, 1, 1), lambda i, k: (i, 0, 0)),
            scratch_shapes=scratch,
        ),
        compiler_params=pltpu.CompilerParams(
            dimension_semantics=("parallel", "arbitrary"),
            vmem_limit_bytes=vmem_limit,
        ),
        cost_estimate=pl.CostEstimate(
            flops=8 * n * c,
            transcendentals=n * c,
            bytes_accessed=n * c * in_bytes + n * 4 + g_r * 4,
        ),
    )(logits, t2)

    # --- tiny scalar epilogue: mean CE -> focal transform -------------------
    log_p = jnp.sum(partials) / jnp.float32(n)
    if gamma == 0.0:
        return log_p                                 # (1 - p) ** 0 == 1
    p = jnp.exp(-log_p)
    return jnp.maximum(1.0 - p, 0.0) ** gamma * log_p


# ---------------------------------------------------------------------------
# Pure-JAX reference (mirrors the PyTorch module)
# ---------------------------------------------------------------------------


def focal_loss_ref(logits, target, gamma=0.0):
    lse = jax.nn.logsumexp(logits.astype(jnp.float32), axis=-1)
    tgt = jnp.take_along_axis(
        logits.astype(jnp.float32), target[:, None].astype(jnp.int32), axis=-1
    )[:, 0]
    log_p = jnp.mean(lse - tgt)                      # CE with 'mean' reduction
    p = jnp.exp(-log_p)
    return (1.0 - p) ** gamma * log_p


# ---------------------------------------------------------------------------
# Demo
# ---------------------------------------------------------------------------

if __name__ == "__main__":
    key = jax.random.PRNGKey(0)
    kx, kt = jax.random.split(key)

    N, C = 8, 16
    logits = 2.0 * jax.random.normal(kx, (N, C), jnp.float32)
    target = jax.random.randint(kt, (N,), 0, C, dtype=jnp.int32)

    out_g0 = focal_loss(logits, target, gamma=0.0)   # default gamma -> plain CE
    out_g2 = focal_loss(logits, target, gamma=2.0)
    jax.block_until_ready((out_g0, out_g2))

    ref_g0 = focal_loss_ref(logits, target, 0.0)
    ref_g2 = focal_loss_ref(logits, target, 2.0)
    assert out_g0.shape == () and out_g2.shape == ()
    assert jnp.allclose(out_g0, ref_g0, atol=1e-5, rtol=1e-5)
    assert jnp.allclose(out_g2, ref_g2, atol=1e-5, rtol=1e-5)

    # Exercise the class-chunked (online log-sum-exp) path, bf16 streaming and
    # the ragged row/class masks at small scale.
    N2, C2 = 12, 160
    kx2, kt2 = jax.random.split(jax.random.PRNGKey(1))
    logits2 = 3.0 * jax.random.normal(kx2, (N2, C2), jnp.bfloat16)
    target2 = jax.random.randint(kt2, (N2,), 0, C2, dtype=jnp.int32)
    out2 = focal_loss(logits2, target2, gamma=2.0, max_class_chunk=128)
    ref2 = focal_loss_ref(logits2, target2, 2.0)
    jax.block_until_ready(out2)
    assert jnp.allclose(out2, ref2, atol=1e-3, rtol=1e-3)

    print("KERNEL_OK")
</pallas_src>

<mosaic_0001>
module attributes {stable_mosaic.version = 11 : i64} {
  func.func @_ce_partial_kernel(%arg0: i32, %arg1: i32, %arg2: memref<8x16xf32, #tpu.memory_space<vmem>>, %arg3: memref<8x1xi32, #tpu.memory_space<vmem>>, %arg4: memref<1x1x1xf32, #tpu.memory_space<vmem>>) attributes {dimension_semantics = [#tpu.dimension_semantics<parallel>, #tpu.dimension_semantics<arbitrary>], iteration_bounds = array<i64: 1, 1>, scalar_prefetch = 0 : i64, scratch_operands = 0 : i64, tpu.core_type = #tpu.core_type<tc>, window_params = [{transform_indices = @transform_0, window_bounds = array<i64: 8, 16>}, {transform_indices = @transform_1, window_bounds = array<i64: 8, 1>}, {transform_indices = @transform_2, window_bounds = array<i64: 1, 1, 1>}]} {
    %c0 = arith.constant 0 : index
    %c0_0 = arith.constant 0 : index
    %0 = vector.load %arg2[%c0, %c0_0] : memref<8x16xf32, #tpu.memory_space<vmem>>, vector<8x16xf32>
    %c0_1 = arith.constant 0 : index
    %c0_2 = arith.constant 0 : index
    %1 = vector.load %arg3[%c0_1, %c0_2] : memref<8x1xi32, #tpu.memory_space<vmem>>, vector<8x1xi32>
    %2 = tpu.iota {dimensions = array<i32: 1>} : vector<8x16xi32>
    %cst = arith.constant dense<0xFF800000> : vector<8xf32>
    %3 = vector.multi_reduction <maximumf>, %0, %cst [1] : vector<8x16xf32> to vector<8xf32>
    %4 = vector.shape_cast %3 : vector<8xf32> to vector<8x1xf32>
    %5 = vector.broadcast %4 : vector<8x1xf32> to vector<8x16xf32>
    %6 = arith.subf %0, %5 : vector<8x16xf32>
    %7 = math.exp %6 : vector<8x16xf32>
    %cst_3 = arith.constant dense<0.000000e+00> : vector<8xf32>
    %8 = vector.multi_reduction <add>, %7, %cst_3 [1] : vector<8x16xf32> to vector<8xf32>
    %9 = vector.shape_cast %8 : vector<8xf32> to vector<8x1xf32>
    %10 = vector.broadcast %1 : vector<8x1xi32> to vector<8x16xi32>
    %11 = arith.cmpi eq, %2, %10 : vector<8x16xi32>
    %cst_4 = arith.constant 0.000000e+00 : f32
    %12 = vector.broadcast %cst_4 : f32 to vector<8x16xf32>
    %13 = arith.select %11, %0, %12 : vector<8x16xi1>, vector<8x16xf32>
    %cst_5 = arith.constant dense<0.000000e+00> : vector<8xf32>
    %14 = vector.multi_reduction <add>, %13, %cst_5 [1] : vector<8x16xf32> to vector<8xf32>
    %15 = vector.shape_cast %14 : vector<8xf32> to vector<8x1xf32>
    %16 = math.log %9 : vector<8x1xf32>
    %17 = arith.addf %16, %4 : vector<8x1xf32>
    %18 = arith.subf %17, %15 : vector<8x1xf32>
    %19 = vector.shape_cast %18 : vector<8x1xf32> to vector<1x8x1xf32>
    %cst_6 = arith.constant dense<0.000000e+00> : vector<1xf32>
    %20 = vector.multi_reduction <add>, %19, %cst_6 [1, 2] : vector<1x8x1xf32> to vector<1xf32>
    %21 = vector.shape_cast %20 : vector<1xf32> to vector<1x1x1xf32>
    %22 = vector.extract %21[0, 0, 0] : f32 from vector<1x1x1xf32>
    %23 = vector.broadcast %22 : f32 to vector<1x1xf32>
    %24 = vector.shape_cast %23 : vector<1x1xf32> to vector<1x1x1xf32>
    %c0_7 = arith.constant 0 : index
    %c0_8 = arith.constant 0 : index
    %c0_9 = arith.constant 0 : index
    %25 = vector.load %arg4[%c0_7, %c0_8, %c0_9] : memref<1x1x1xf32, #tpu.memory_space<vmem>>, vector<1x1x1xf32>
    tpu.vector_store %arg4[%c0_7, %c0_8, %c0_9], %24 {strides = array<i32>} : memref<1x1x1xf32, #tpu.memory_space<vmem>>, vector<1x1x1xf32>,
    return
  }
  func.func @transform_0(%arg0: i32, %arg1: i32) -> (i32, i32) {
    %c0_i32 = arith.constant 0 : i32
    return %arg0, %arg1 : i32, i32
  }
  func.func @transform_1(%arg0: i32, %arg1: i32) -> (i32, i32) {
    %c0_i32 = arith.constant 0 : i32
    %c0_i32_0 = arith.constant 0 : i32
    return %arg0, %c0_i32 : i32, i32
  }
  func.func @transform_2(%arg0: i32, %arg1: i32) -> (i32, i32, i32) {
    %c0_i32 = arith.constant 0 : i32
    %c0_i32_0 = arith.constant 0 : i32
    %c0_i32_1 = arith.constant 0 : i32
    return %arg0, %c0_i32, %c0_i32_0 : i32, i32, i32
  }
}

</mosaic_0001>

<llo_original>
// kernel: tpu_custom_call.1
$region0: #{tpu_custom_call.1}
  #allocation0 [shape = 'u32[]', space=smem, size = 0x4, offset = 0x4, fixed_abs, tag = 'smem constant byte address 0x4 - core index']
  #allocation1 [shape = 'u32[144,128]{1,0:T(1,128)}', space=vmem, size = 0x12000, scoped, tag = 'internal scratch']
  %s0 = inlined_call_operand.vmem [shape: f32[8,16], index: 0, kind: input, shape index: {}]
  %s1 = inlined_call_operand.vmem [shape: s32[8,1], index: 1, kind: input, shape index: {}]
  %s2 = inlined_call_operand.hbm [shape: f32[1,1,1], index: 2, kind: output, shape index: {}]
  %s3 = sld [smem:[#allocation0]]
  $region18: #{tpu_custom_call.1} parent=0
    _
  %s5 = ssub.s32 1, %s3
  %s6 = scalar_select 0, %s5, %s3
  $region1: #{tpu_custom_call.1} parent=0
    #allocation2 [shape = 'u8[512]{0}', space=vmem, size = 0x400, scoped, tag = 'output window, operand 0, single buffered']
    #allocation3 [shape = 's32[1]{0}', space=sflag, size = 0x4, scoped, tag = 'scoped memory for tpu_custom_call.1']
    %7 = vsyncpa [#allocation3], 0
    // Predicated region
    $region2: #{tpu_custom_call.1} parent=1 // pred_check
      _
    $region3: #{tpu_custom_call.1} parent=1 // pred_check_branch
      %9 = sbr.rel (0) target = $region5
    $region4: #{tpu_custom_call.1} parent=1 // pred_region
      _
    $region5: #{tpu_custom_call.1} parent=1 // pred_fallthru
      _
    // Predicated region
    $region6: #{tpu_custom_call.1} parent=1 // pred_check
      _
    $region7: #{tpu_custom_call.1} parent=1 // pred_check_branch
      %11 = sbr.rel (0) target = $region9
    $region8: #{tpu_custom_call.1} parent=1 // pred_region
      _
    $region9: #{tpu_custom_call.1} parent=1 // pred_fallthru
      _
    %v12 = vld [vmem:[%s0] sm:$0xff]
    %v13 = vld [vmem:[%s1] sm:$0xff]
    %v14 = vlaneseq
    %v15 = vand.u32 %v14, 127
    %vm16 = vcmask 130048
    %v17 = vsel %vm16, %v12, -inf
    %18 = vmax.xlane.f32.xlu0 %v17
    %v19 = vpop.xlane.xlu0 %18
    %v20 = vsub.f32 %v12, %v19
    %v21 = vmul.f32 %v20, 1.442695
    %v22 = vpow.pop %v21
    %v23 = vsel %vm16, %v22, 0.0
    %24 = vadd.xlane.f32.xlu0 %v23
    %v25 = vpop.xlane.xlu0 %24
    %26 = vset.pattern.permute.xlu0 0
    %27 = vperm.xlu0 %26, %v13
    %v28 = vpop.permute.xlu0 %27
    %vm29 = vcmp.eq.s32.totalorder %v15, %v28
    %v30 = vsel %vm29, %v12, 0.0
    %v31 = vsel %vm16, %v30, 0.0
    %32 = vadd.xlane.f32.xlu0 %v31
    %v33 = vpop.xlane.xlu0 %32
    %v34 = vlog2.pop %v25
    %v35 = vmul.f32 %v34, 0.6931472
    %v36 = vadd.f32 %v35, %v19
    %v37 = vsub.f32 %v36, %v33
    %vm38 = vcmask 7168
    %v39 = vsel %vm38, %v37, 0.0
    %40 = vadd.xlane.f32.xlu0 %v39
    %v41 = vpop.xlane.xlu0 %40
    %v42 = vrot.slane %v41, 4
    %v43 = vadd.f32 %v41, %v42
    %v44 = vrot.slane %v43, 2
    %v45 = vadd.f32 %v43, %v44
    %v46 = vrot.slane %v45, 1
    %v47 = vadd.f32 %v45, %v46
    %s48 = vtos %v47
    %v49 = vstv %s48
    %vm50 = vcmask 0
    %51 = vst.msk [vmem:[#allocation2] sm:$0x1] %vm50, %v49
    // Predicated region
    $region10: #{tpu_custom_call.1} parent=1 // pred_check
      _
    $region11: #{tpu_custom_call.1} parent=1 // pred_check_branch
      %53 = sbr.rel (0) target = $region13
    $region12: #{tpu_custom_call.1} parent=1 // pred_region
      %s55 = ssub.s32 16, 16
      %56 = vsyncadd [#allocation3], %s55
      %s58 = sshll.u32 [#allocation2], 4
      %s59 = int_to_ptr.vmem [resolvable:$true] %s58
      %61 = dma.vmem_to_hbm [thread:$0]  %s59, 16, %s2, [#allocation3]
    $region13: #{tpu_custom_call.1} parent=1 // pred_fallthru
      _
    // Predicated region
    $region14: #{tpu_custom_call.1} parent=1 // pred_check
      _
    $region15: #{tpu_custom_call.1} parent=1 // pred_check_branch
      %63 = sbr.rel (0) target = $region17
    $region16: #{tpu_custom_call.1} parent=1 // pred_region
      %64 = dma.done [#allocation3], 16
    $region17: #{tpu_custom_call.1} parent=1 // pred_fallthru
      _
    %65 = vsyncpa [#allocation3], 1

</llo_original>
